<compile_context>
chip_gen: v5e
topology: v5e:2x2
jax: 0.10.0
libtpu: 0.0.40
codegen_flags: <defaults>
</compile_context>

<pallas_src>
import math
import jax
import jax.numpy as jnp
from jax.experimental import pallas as pl
from jax.experimental.pallas import tpu as pltpu

LANE = 128


def _round_up(n, m):
    return ((n + m - 1) // m) * m


# ---------------------------------------------------------------------------
# Parameter packing: fold BN/bias, pad, and concatenate into one slab.
# ---------------------------------------------------------------------------
def pack_params(params, param_dtype=jnp.float32):
    """Pack all folded block params + fc into ONE (rows, 128) slab.

    Every weight matrix is zero-padded to a full (128, 128) tile (K padded to
    the 128-lane activation width, N padded to 128 lanes); all of a block's
    biases share one (8, 128) tile (rows: 0=b1, 1=b2*s1+t1, 2=b3*s3+t3,
    3=bs*ss+ts if shortcut).  Offsets are Python ints -> static, tile-aligned
    ref slices inside the kernel.
    """
    chunks = []
    off = 0

    def push(mat, pad_rows):
        nonlocal off
        r, c = mat.shape
        chunks.append(jnp.pad(mat, ((0, pad_rows - r), (0, LANE - c))))
        start = off
        off += pad_rows
        return start

    block_layout = []
    n_weights = 0
    for p in params["blocks"]:
        od = p["out_dim"]
        # Fold eval-mode BN affine + biases into the preceding Linear.
        w2f = p["w2"] * p["s1"]
        b2f = p["b2"] * p["s1"] + p["t1"]
        w3af = p["w3"][:od] * p["s3"]
        w3bf = p["w3"][od:] * p["s3"]
        b3f = p["b3"] * p["s3"] + p["t3"]

        blk = {"has_shortcut": p["has_shortcut"]}
        blk["w1"] = push(p["w1"], LANE)
        blk["w2"] = push(w2f, LANE)
        blk["w3a"] = push(w3af, LANE)
        blk["w3b"] = push(w3bf, LANE)
        n_weights += 4

        bias_rows = [p["b1"], b2f, b3f]
        if p["has_shortcut"]:
            wsf = p["ws"] * p["ss"]
            bsf = p["bs"] * p["ss"] + p["ts"]
            blk["ws"] = push(wsf, LANE)
            n_weights += 1
            bias_rows.append(bsf)
        blk["bias"] = push(jnp.concatenate(bias_rows, axis=0), 8)
        block_layout.append(blk)

    fc_off = push(params["fc_w"], LANE)
    n_weights += 1

    slab = jnp.concatenate(chunks, axis=0).astype(param_dtype)
    layout = {"blocks": block_layout, "fc": fc_off,
              "total_rows": off, "n_weights": n_weights}
    return slab, layout


# ---------------------------------------------------------------------------
# Fused whole-network kernel (all residual blocks + fc in one invocation).
# ---------------------------------------------------------------------------
def build_fused_kernel(layout, param_dtype):
    blocks = layout["blocks"]
    fc_off = layout["fc"]

    def kernel(x_ref, w_ref, out_ref, feat_ref):
        def weight(o):                       # static, tile-aligned slice
            return w_ref[o:o + LANE, :]

        def bias(boff, idx):                 # one row of the block's bias tile
            return w_ref[boff + idx:boff + idx + 1, :].astype(jnp.float32)

        x = x_ref[...]                       # (TB, 128) f32
        for blk in blocks:                   # statically unrolled (shapes differ)
            xa = x.astype(param_dtype)
            # left: Linear -> ReLU -> Dropout(eval=id) -> Linear -> BN(folded)
            h = jnp.maximum(
                jnp.dot(xa, weight(blk["w1"]),
                        preferred_element_type=jnp.float32)
                + bias(blk["bias"], 0), 0.0)
            h = (jnp.dot(h.astype(param_dtype), weight(blk["w2"]),
                         preferred_element_type=jnp.float32)
                 + bias(blk["bias"], 1))
            # shortcut: Linear + BN (folded), or identity
            if blk["has_shortcut"]:
                r = (jnp.dot(xa, weight(blk["ws"]),
                             preferred_element_type=jnp.float32)
                     + bias(blk["bias"], 3))
            else:
                r = x
            # bottleneck: cat([h, r]) @ w3 == h@w3a + r@w3b, + BN(folded), ReLU
            z = (jnp.dot(h.astype(param_dtype), weight(blk["w3a"]),
                         preferred_element_type=jnp.float32)
                 + jnp.dot(r.astype(param_dtype), weight(blk["w3b"]),
                           preferred_element_type=jnp.float32)
                 + bias(blk["bias"], 2))
            x = jnp.maximum(z, 0.0)

        out_ref[...] = jnp.dot(x.astype(param_dtype), weight(fc_off),
                               preferred_element_type=jnp.float32)
        feat_ref[...] = x

    return kernel


# ---------------------------------------------------------------------------
# Forward wrapper
# ---------------------------------------------------------------------------
def resnet1d_bottleneck_forward(x, params, *, param_dtype=jnp.float32,
                                batch_block=None):
    slab, layout = pack_params(params, param_dtype)
    B, indim = x.shape
    feat_dim, num_class = params["fc_w"].shape

    if batch_block is None:
        B_pad = _round_up(max(B, 8), 8)
    else:
        batch_block = _round_up(batch_block, 8)
        B_pad = _round_up(max(B, batch_block), batch_block)

    # Lane-dense, zero-padded input slab; padded lanes/rows stay zero through
    # the whole network (zero weight rows + zero bias lanes + ReLU).
    x_pad = jnp.zeros((B_pad, LANE), jnp.float32).at[:B, :indim].set(x)

    kernel = build_fused_kernel(layout, param_dtype)
    out_shape = (jax.ShapeDtypeStruct((B_pad, LANE), jnp.float32),   # logits
                 jax.ShapeDtypeStruct((B_pad, LANE), jnp.float32))   # features
    cost = pl.CostEstimate(
        flops=int(2 * B_pad * LANE * LANE * layout["n_weights"]),
        transcendentals=0,
        bytes_accessed=int(slab.size * slab.dtype.itemsize
                           + x_pad.size * 4 + 2 * B_pad * LANE * 4))

    if batch_block is None:
        # Tiny-B path: one grid-less invocation, everything resident in VMEM.
        vspec = pl.BlockSpec(memory_space=pltpu.MemorySpace.VMEM)
        out, feat = pl.pallas_call(
            kernel, out_shape=out_shape,
            in_specs=[vspec, vspec],
            out_specs=(vspec, vspec),
            cost_estimate=cost,
        )(x_pad, slab)
    else:
        # Realistic-B path: batch grid, weights resident across grid steps,
        # batch axis sharded across TensorCores (v7x megacore).
        rows = layout["total_rows"]
        out, feat = pl.pallas_call(
            kernel, out_shape=out_shape,
            grid=(B_pad // batch_block,),
            in_specs=[pl.BlockSpec((batch_block, LANE), lambda i: (i, 0)),
                      pl.BlockSpec((rows, LANE), lambda i: (0, 0))],
            out_specs=(pl.BlockSpec((batch_block, LANE), lambda i: (i, 0)),
                       pl.BlockSpec((batch_block, LANE), lambda i: (i, 0))),
            compiler_params=pltpu.CompilerParams(
                dimension_semantics=("parallel",)),
            cost_estimate=cost,
        )(x_pad, slab)

    return out[:B, :num_class], feat[:B, :feat_dim]


# ---------------------------------------------------------------------------
# Deterministic parameter construction (PyTorch-style init; W stored as
# (in, out), i.e. the transpose of nn.Linear.weight, so kernels do x @ W).
# ---------------------------------------------------------------------------
def _linear(key, in_dim, out_dim, bias=True):
    kw, kb = jax.random.split(key)
    bound = 1.0 / math.sqrt(in_dim)
    w = jax.random.uniform(kw, (in_dim, out_dim), jnp.float32, -bound, bound)
    b = (jax.random.uniform(kb, (1, out_dim), jnp.float32, -bound, bound)
         if bias else jnp.zeros((1, out_dim), jnp.float32))
    return w, b


def _bn_affine(key, dim, eps=1e-5):
    # eval-mode BN with running_mean=0, running_var=1 (fresh PyTorch defaults)
    kg, kb = jax.random.split(key)
    gamma = 1.0 + 0.05 * jax.random.uniform(kg, (1, dim), jnp.float32, -1.0, 1.0)
    beta = 0.05 * jax.random.uniform(kb, (1, dim), jnp.float32, -1.0, 1.0)
    return gamma / jnp.sqrt(1.0 + eps), beta


def make_block_params(key, in_dim, out_dim, has_shortcut):
    keys = jax.random.split(key, 7)
    p = dict(in_dim=in_dim, out_dim=out_dim, has_shortcut=has_shortcut)
    p["w1"], p["b1"] = _linear(keys[0], in_dim, out_dim)      # left Linear 1
    p["w2"], p["b2"] = _linear(keys[1], out_dim, out_dim)     # left Linear 2
    p["s1"], p["t1"] = _bn_affine(keys[2], out_dim)           # left BN
    if has_shortcut:
        p["ws"], p["bs"] = _linear(keys[3], in_dim, out_dim)  # shortcut Linear
        p["ss"], p["ts"] = _bn_affine(keys[4], out_dim)       # shortcut BN
    p["w3"], p["b3"] = _linear(keys[5], 2 * out_dim, out_dim) # bottleneck Linear
    p["s3"], p["t3"] = _bn_affine(keys[6], out_dim)           # bottleneck BN
    return p


def make_resnet_params(key, channels, indim, num_class, blocks):
    params = {"blocks": []}
    in_c = indim
    for block_num, out_c in zip(blocks, channels):
        key, sub = jax.random.split(key)
        for b in range(block_num):
            sub, k = jax.random.split(sub)
            params["blocks"].append(
                make_block_params(k, in_c if b == 0 else out_c, out_c,
                                  has_shortcut=(b == 0)))
        in_c = out_c
    key, kfc = jax.random.split(key)
    bound = 1.0 / math.sqrt(channels[-1])
    params["fc_w"] = jax.random.uniform(
        kfc, (channels[-1], num_class), jnp.float32, -bound, bound)
    return params


# ---------------------------------------------------------------------------
# Pure-JAX reference (un-folded params, exact module semantics in eval mode)
# ---------------------------------------------------------------------------
def reference_forward(x, params):
    for p in params["blocks"]:
        h = jnp.maximum(x @ p["w1"] + p["b1"], 0.0)          # Linear -> ReLU -> Dropout(id)
        h = (h @ p["w2"] + p["b2"]) * p["s1"] + p["t1"]      # Linear -> BN
        if p["has_shortcut"]:
            r = (x @ p["ws"] + p["bs"]) * p["ss"] + p["ts"]  # shortcut Linear -> BN
        else:
            r = x
        z = jnp.concatenate([h, r], axis=-1) @ p["w3"] + p["b3"]
        z = z * p["s3"] + p["t3"]                            # bottleneck Linear -> BN
        x = jnp.maximum(z, 0.0)                              # ReLU
    return x @ params["fc_w"], x


if __name__ == "__main__":
    key = jax.random.PRNGKey(0)
    kx, kp = jax.random.split(key)

    # small shapes consistent with the module's forward (x is 2-D [B, indim])
    B, indim, num_class = 4, 12, 5
    channels = [8, 16, 32]
    blocks = [2, 1, 1]

    x = jax.random.normal(kx, (B, indim), jnp.float32)
    params = make_resnet_params(kp, channels, indim, num_class, blocks)

    # Tiny-batch path: grid=(), single param-slab DMA, lane-dense outputs.
    out, feat = resnet1d_bottleneck_forward(x, params)
    jax.block_until_ready((out, feat))

    ref_out, ref_feat = reference_forward(x, params)
    assert out.shape == (B, num_class), out.shape
    assert feat.shape == (B, channels[-1]), feat.shape
    assert jnp.all(jnp.isfinite(out)) and jnp.all(jnp.isfinite(feat))
    assert jnp.allclose(out, ref_out, rtol=1e-5, atol=1e-5)
    assert jnp.allclose(feat, ref_feat, rtol=1e-5, atol=1e-5)

    # Realistic-batch path: batch grid axis, resident weight slab,
    # dimension_semantics=("parallel",).
    B2 = 512
    x2 = jax.random.normal(jax.random.PRNGKey(1), (B2, indim), jnp.float32)
    out2, feat2 = resnet1d_bottleneck_forward(x2, params, batch_block=256)
    jax.block_until_ready((out2, feat2))
    ref_out2, ref_feat2 = reference_forward(x2, params)
    assert jnp.allclose(out2, ref_out2, rtol=1e-5, atol=1e-4)
    assert jnp.allclose(feat2, ref_feat2, rtol=1e-5, atol=1e-4)

    print("KERNEL_OK")
</pallas_src>

<mosaic_0001>
module attributes {stable_mosaic.version = 11 : i64} {
  func.func @kernel(%arg0: memref<8x128xf32, #tpu.memory_space<vmem>>, %arg1: memref<2592x128xf32, #tpu.memory_space<vmem>>, %arg2: memref<8x128xf32, #tpu.memory_space<vmem>>, %arg3: memref<8x128xf32, #tpu.memory_space<vmem>>) attributes {dimension_semantics = [], scalar_prefetch = 0 : i64, scratch_operands = 0 : i64, tpu.core_type = #tpu.core_type<tc>} {
    %c0 = arith.constant 0 : index
    %c0_0 = arith.constant 0 : index
    %0 = vector.load %arg0[%c0, %c0_0] : memref<8x128xf32, #tpu.memory_space<vmem>>, vector<8x128xf32>
    %c0_1 = arith.constant 0 : index
    %c0_2 = arith.constant 0 : index
    %1 = vector.load %arg1[%c0_1, %c0_2] : memref<2592x128xf32, #tpu.memory_space<vmem>>, vector<128x128xf32>
    %cst = arith.constant dense<0.000000e+00> : vector<8x128xf32>
    %2 = tpu.matmul %0, %1, %cst {dimension_numbers = #tpu.dot_dimension_numbers<[1], [0], [0], [1], [0, 0, 1, 1], [], []>} : vector<8x128xf32>, vector<128x128xf32>, vector<8x128xf32> -> vector<8x128xf32>
    %c640 = arith.constant 640 : index
    %c0_3 = arith.constant 0 : index
    %3 = vector.load %arg1[%c640, %c0_3] : memref<2592x128xf32, #tpu.memory_space<vmem>>, vector<1x128xf32>
    %4 = vector.broadcast %3 : vector<1x128xf32> to vector<8x128xf32>
    %5 = arith.addf %2, %4 : vector<8x128xf32>
    %cst_4 = arith.constant 0.000000e+00 : f32
    %6 = vector.broadcast %cst_4 : f32 to vector<8x128xf32>
    %7 = arith.maximumf %5, %6 : vector<8x128xf32>
    %c128 = arith.constant 128 : index
    %c0_5 = arith.constant 0 : index
    %8 = vector.load %arg1[%c128, %c0_5] : memref<2592x128xf32, #tpu.memory_space<vmem>>, vector<128x128xf32>
    %cst_6 = arith.constant dense<0.000000e+00> : vector<8x128xf32>
    %9 = tpu.matmul %7, %8, %cst_6 {dimension_numbers = #tpu.dot_dimension_numbers<[1], [0], [0], [1], [0, 0, 1, 1], [], []>} : vector<8x128xf32>, vector<128x128xf32>, vector<8x128xf32> -> vector<8x128xf32>
    %c641 = arith.constant 641 : index
    %c0_7 = arith.constant 0 : index
    %10 = vector.load %arg1[%c641, %c0_7] : memref<2592x128xf32, #tpu.memory_space<vmem>>, vector<1x128xf32>
    %11 = vector.broadcast %10 : vector<1x128xf32> to vector<8x128xf32>
    %12 = arith.addf %9, %11 : vector<8x128xf32>
    %c512 = arith.constant 512 : index
    %c0_8 = arith.constant 0 : index
    %13 = vector.load %arg1[%c512, %c0_8] : memref<2592x128xf32, #tpu.memory_space<vmem>>, vector<128x128xf32>
    %cst_9 = arith.constant dense<0.000000e+00> : vector<8x128xf32>
    %14 = tpu.matmul %0, %13, %cst_9 {dimension_numbers = #tpu.dot_dimension_numbers<[1], [0], [0], [1], [0, 0, 1, 1], [], []>} : vector<8x128xf32>, vector<128x128xf32>, vector<8x128xf32> -> vector<8x128xf32>
    %c643 = arith.constant 643 : index
    %c0_10 = arith.constant 0 : index
    %15 = vector.load %arg1[%c643, %c0_10] : memref<2592x128xf32, #tpu.memory_space<vmem>>, vector<1x128xf32>
    %16 = vector.broadcast %15 : vector<1x128xf32> to vector<8x128xf32>
    %17 = arith.addf %14, %16 : vector<8x128xf32>
    %c256 = arith.constant 256 : index
    %c0_11 = arith.constant 0 : index
    %18 = vector.load %arg1[%c256, %c0_11] : memref<2592x128xf32, #tpu.memory_space<vmem>>, vector<128x128xf32>
    %cst_12 = arith.constant dense<0.000000e+00> : vector<8x128xf32>
    %19 = tpu.matmul %12, %18, %cst_12 {dimension_numbers = #tpu.dot_dimension_numbers<[1], [0], [0], [1], [0, 0, 1, 1], [], []>} : vector<8x128xf32>, vector<128x128xf32>, vector<8x128xf32> -> vector<8x128xf32>
    %c384 = arith.constant 384 : index
    %c0_13 = arith.constant 0 : index
    %20 = vector.load %arg1[%c384, %c0_13] : memref<2592x128xf32, #tpu.memory_space<vmem>>, vector<128x128xf32>
    %cst_14 = arith.constant dense<0.000000e+00> : vector<8x128xf32>
    %21 = tpu.matmul %17, %20, %cst_14 {dimension_numbers = #tpu.dot_dimension_numbers<[1], [0], [0], [1], [0, 0, 1, 1], [], []>} : vector<8x128xf32>, vector<128x128xf32>, vector<8x128xf32> -> vector<8x128xf32>
    %22 = arith.addf %19, %21 : vector<8x128xf32>
    %c642 = arith.constant 642 : index
    %c0_15 = arith.constant 0 : index
    %23 = vector.load %arg1[%c642, %c0_15] : memref<2592x128xf32, #tpu.memory_space<vmem>>, vector<1x128xf32>
    %24 = vector.broadcast %23 : vector<1x128xf32> to vector<8x128xf32>
    %25 = arith.addf %22, %24 : vector<8x128xf32>
    %cst_16 = arith.constant 0.000000e+00 : f32
    %26 = vector.broadcast %cst_16 : f32 to vector<8x128xf32>
    %27 = arith.maximumf %25, %26 : vector<8x128xf32>
    %c648 = arith.constant 648 : index
    %c0_17 = arith.constant 0 : index
    %28 = vector.load %arg1[%c648, %c0_17] : memref<2592x128xf32, #tpu.memory_space<vmem>>, vector<128x128xf32>
    %cst_18 = arith.constant dense<0.000000e+00> : vector<8x128xf32>
    %29 = tpu.matmul %27, %28, %cst_18 {dimension_numbers = #tpu.dot_dimension_numbers<[1], [0], [0], [1], [0, 0, 1, 1], [], []>} : vector<8x128xf32>, vector<128x128xf32>, vector<8x128xf32> -> vector<8x128xf32>
    %c1160 = arith.constant 1160 : index
    %c0_19 = arith.constant 0 : index
    %30 = vector.load %arg1[%c1160, %c0_19] : memref<2592x128xf32, #tpu.memory_space<vmem>>, vector<1x128xf32>
    %31 = vector.broadcast %30 : vector<1x128xf32> to vector<8x128xf32>
    %32 = arith.addf %29, %31 : vector<8x128xf32>
    %cst_20 = arith.constant 0.000000e+00 : f32
    %33 = vector.broadcast %cst_20 : f32 to vector<8x128xf32>
    %34 = arith.maximumf %32, %33 : vector<8x128xf32>
    %c776 = arith.constant 776 : index
    %c0_21 = arith.constant 0 : index
    %35 = vector.load %arg1[%c776, %c0_21] : memref<2592x128xf32, #tpu.memory_space<vmem>>, vector<128x128xf32>
    %cst_22 = arith.constant dense<0.000000e+00> : vector<8x128xf32>
    %36 = tpu.matmul %34, %35, %cst_22 {dimension_numbers = #tpu.dot_dimension_numbers<[1], [0], [0], [1], [0, 0, 1, 1], [], []>} : vector<8x128xf32>, vector<128x128xf32>, vector<8x128xf32> -> vector<8x128xf32>
    %c1161 = arith.constant 1161 : index
    %c0_23 = arith.constant 0 : index
    %37 = vector.load %arg1[%c1161, %c0_23] : memref<2592x128xf32, #tpu.memory_space<vmem>>, vector<1x128xf32>
    %38 = vector.broadcast %37 : vector<1x128xf32> to vector<8x128xf32>
    %39 = arith.addf %36, %38 : vector<8x128xf32>
    %c904 = arith.constant 904 : index
    %c0_24 = arith.constant 0 : index
    %40 = vector.load %arg1[%c904, %c0_24] : memref<2592x128xf32, #tpu.memory_space<vmem>>, vector<128x128xf32>
    %cst_25 = arith.constant dense<0.000000e+00> : vector<8x128xf32>
    %41 = tpu.matmul %39, %40, %cst_25 {dimension_numbers = #tpu.dot_dimension_numbers<[1], [0], [0], [1], [0, 0, 1, 1], [], []>} : vector<8x128xf32>, vector<128x128xf32>, vector<8x128xf32> -> vector<8x128xf32>
    %c1032 = arith.constant 1032 : index
    %c0_26 = arith.constant 0 : index
    %42 = vector.load %arg1[%c1032, %c0_26] : memref<2592x128xf32, #tpu.memory_space<vmem>>, vector<128x128xf32>
    %cst_27 = arith.constant dense<0.000000e+00> : vector<8x128xf32>
    %43 = tpu.matmul %27, %42, %cst_27 {dimension_numbers = #tpu.dot_dimension_numbers<[1], [0], [0], [1], [0, 0, 1, 1], [], []>} : vector<8x128xf32>, vector<128x128xf32>, vector<8x128xf32> -> vector<8x128xf32>
    %44 = arith.addf %41, %43 : vector<8x128xf32>
    %c1162 = arith.constant 1162 : index
    %c0_28 = arith.constant 0 : index
    %45 = vector.load %arg1[%c1162, %c0_28] : memref<2592x128xf32, #tpu.memory_space<vmem>>, vector<1x128xf32>
    %46 = vector.broadcast %45 : vector<1x128xf32> to vector<8x128xf32>
    %47 = arith.addf %44, %46 : vector<8x128xf32>
    %cst_29 = arith.constant 0.000000e+00 : f32
    %48 = vector.broadcast %cst_29 : f32 to vector<8x128xf32>
    %49 = arith.maximumf %47, %48 : vector<8x128xf32>
    %c1168 = arith.constant 1168 : index
    %c0_30 = arith.constant 0 : index
    %50 = vector.load %arg1[%c1168, %c0_30] : memref<2592x128xf32, #tpu.memory_space<vmem>>, vector<128x128xf32>
    %cst_31 = arith.constant dense<0.000000e+00> : vector<8x128xf32>
    %51 = tpu.matmul %49, %50, %cst_31 {dimension_numbers = #tpu.dot_dimension_numbers<[1], [0], [0], [1], [0, 0, 1, 1], [], []>} : vector<8x128xf32>, vector<128x128xf32>, vector<8x128xf32> -> vector<8x128xf32>
    %c1808 = arith.constant 1808 : index
    %c0_32 = arith.constant 0 : index
    %52 = vector.load %arg1[%c1808, %c0_32] : memref<2592x128xf32, #tpu.memory_space<vmem>>, vector<1x128xf32>
    %53 = vector.broadcast %52 : vector<1x128xf32> to vector<8x128xf32>
    %54 = arith.addf %51, %53 : vector<8x128xf32>
    %cst_33 = arith.constant 0.000000e+00 : f32
    %55 = vector.broadcast %cst_33 : f32 to vector<8x128xf32>
    %56 = arith.maximumf %54, %55 : vector<8x128xf32>
    %c1296 = arith.constant 1296 : index
    %c0_34 = arith.constant 0 : index
    %57 = vector.load %arg1[%c1296, %c0_34] : memref<2592x128xf32, #tpu.memory_space<vmem>>, vector<128x128xf32>
    %cst_35 = arith.constant dense<0.000000e+00> : vector<8x128xf32>
    %58 = tpu.matmul %56, %57, %cst_35 {dimension_numbers = #tpu.dot_dimension_numbers<[1], [0], [0], [1], [0, 0, 1, 1], [], []>} : vector<8x128xf32>, vector<128x128xf32>, vector<8x128xf32> -> vector<8x128xf32>
    %c1809 = arith.constant 1809 : index
    %c0_36 = arith.constant 0 : index
    %59 = vector.load %arg1[%c1809, %c0_36] : memref<2592x128xf32, #tpu.memory_space<vmem>>, vector<1x128xf32>
    %60 = vector.broadcast %59 : vector<1x128xf32> to vector<8x128xf32>
    %61 = arith.addf %58, %60 : vector<8x128xf32>
    %c1680 = arith.constant 1680 : index
    %c0_37 = arith.constant 0 : index
    %62 = vector.load %arg1[%c1680, %c0_37] : memref<2592x128xf32, #tpu.memory_space<vmem>>, vector<128x128xf32>
    %cst_38 = arith.constant dense<0.000000e+00> : vector<8x128xf32>
    %63 = tpu.matmul %49, %62, %cst_38 {dimension_numbers = #tpu.dot_dimension_numbers<[1], [0], [0], [1], [0, 0, 1, 1], [], []>} : vector<8x128xf32>, vector<128x128xf32>, vector<8x128xf32> -> vector<8x128xf32>
    %c1811 = arith.constant 1811 : index
    %c0_39 = arith.constant 0 : index
    %64 = vector.load %arg1[%c1811, %c0_39] : memref<2592x128xf32, #tpu.memory_space<vmem>>, vector<1x128xf32>
    %65 = vector.broadcast %64 : vector<1x128xf32> to vector<8x128xf32>
    %66 = arith.addf %63, %65 : vector<8x128xf32>
    %c1424 = arith.constant 1424 : index
    %c0_40 = arith.constant 0 : index
    %67 = vector.load %arg1[%c1424, %c0_40] : memref<2592x128xf32, #tpu.memory_space<vmem>>, vector<128x128xf32>
    %cst_41 = arith.constant dense<0.000000e+00> : vector<8x128xf32>
    %68 = tpu.matmul %61, %67, %cst_41 {dimension_numbers = #tpu.dot_dimension_numbers<[1], [0], [0], [1], [0, 0, 1, 1], [], []>} : vector<8x128xf32>, vector<128x128xf32>, vector<8x128xf32> -> vector<8x128xf32>
    %c1552 = arith.constant 1552 : index
    %c0_42 = arith.constant 0 : index
    %69 = vector.load %arg1[%c1552, %c0_42] : memref<2592x128xf32, #tpu.memory_space<vmem>>, vector<128x128xf32>
    %cst_43 = arith.constant dense<0.000000e+00> : vector<8x128xf32>
    %70 = tpu.matmul %66, %69, %cst_43 {dimension_numbers = #tpu.dot_dimension_numbers<[1], [0], [0], [1], [0, 0, 1, 1], [], []>} : vector<8x128xf32>, vector<128x128xf32>, vector<8x128xf32> -> vector<8x128xf32>
    %71 = arith.addf %68, %70 : vector<8x128xf32>
    %c1810 = arith.constant 1810 : index
    %c0_44 = arith.constant 0 : index
    %72 = vector.load %arg1[%c1810, %c0_44] : memref<2592x128xf32, #tpu.memory_space<vmem>>, vector<1x128xf32>
    %73 = vector.broadcast %72 : vector<1x128xf32> to vector<8x128xf32>
    %74 = arith.addf %71, %73 : vector<8x128xf32>
    %cst_45 = arith.constant 0.000000e+00 : f32
    %75 = vector.broadcast %cst_45 : f32 to vector<8x128xf32>
    %76 = arith.maximumf %74, %75 : vector<8x128xf32>
    %c1816 = arith.constant 1816 : index
    %c0_46 = arith.constant 0 : index
    %77 = vector.load %arg1[%c1816, %c0_46] : memref<2592x128xf32, #tpu.memory_space<vmem>>, vector<128x128xf32>
    %cst_47 = arith.constant dense<0.000000e+00> : vector<8x128xf32>
    %78 = tpu.matmul %76, %77, %cst_47 {dimension_numbers = #tpu.dot_dimension_numbers<[1], [0], [0], [1], [0, 0, 1, 1], [], []>} : vector<8x128xf32>, vector<128x128xf32>, vector<8x128xf32> -> vector<8x128xf32>
    %c2456 = arith.constant 2456 : index
    %c0_48 = arith.constant 0 : index
    %79 = vector.load %arg1[%c2456, %c0_48] : memref<2592x128xf32, #tpu.memory_space<vmem>>, vector<1x128xf32>
    %80 = vector.broadcast %79 : vector<1x128xf32> to vector<8x128xf32>
    %81 = arith.addf %78, %80 : vector<8x128xf32>
    %cst_49 = arith.constant 0.000000e+00 : f32
    %82 = vector.broadcast %cst_49 : f32 to vector<8x128xf32>
    %83 = arith.maximumf %81, %82 : vector<8x128xf32>
    %c1944 = arith.constant 1944 : index
    %c0_50 = arith.constant 0 : index
    %84 = vector.load %arg1[%c1944, %c0_50] : memref<2592x128xf32, #tpu.memory_space<vmem>>, vector<128x128xf32>
    %cst_51 = arith.constant dense<0.000000e+00> : vector<8x128xf32>
    %85 = tpu.matmul %83, %84, %cst_51 {dimension_numbers = #tpu.dot_dimension_numbers<[1], [0], [0], [1], [0, 0, 1, 1], [], []>} : vector<8x128xf32>, vector<128x128xf32>, vector<8x128xf32> -> vector<8x128xf32>
    %c2457 = arith.constant 2457 : index
    %c0_52 = arith.constant 0 : index
    %86 = vector.load %arg1[%c2457, %c0_52] : memref<2592x128xf32, #tpu.memory_space<vmem>>, vector<1x128xf32>
    %87 = vector.broadcast %86 : vector<1x128xf32> to vector<8x128xf32>
    %88 = arith.addf %85, %87 : vector<8x128xf32>
    %c2328 = arith.constant 2328 : index
    %c0_53 = arith.constant 0 : index
    %89 = vector.load %arg1[%c2328, %c0_53] : memref<2592x128xf32, #tpu.memory_space<vmem>>, vector<128x128xf32>
    %cst_54 = arith.constant dense<0.000000e+00> : vector<8x128xf32>
    %90 = tpu.matmul %76, %89, %cst_54 {dimension_numbers = #tpu.dot_dimension_numbers<[1], [0], [0], [1], [0, 0, 1, 1], [], []>} : vector<8x128xf32>, vector<128x128xf32>, vector<8x128xf32> -> vector<8x128xf32>
    %c2459 = arith.constant 2459 : index
    %c0_55 = arith.constant 0 : index
    %91 = vector.load %arg1[%c2459, %c0_55] : memref<2592x128xf32, #tpu.memory_space<vmem>>, vector<1x128xf32>
    %92 = vector.broadcast %91 : vector<1x128xf32> to vector<8x128xf32>
    %93 = arith.addf %90, %92 : vector<8x128xf32>
    %c2072 = arith.constant 2072 : index
    %c0_56 = arith.constant 0 : index
    %94 = vector.load %arg1[%c2072, %c0_56] : memref<2592x128xf32, #tpu.memory_space<vmem>>, vector<128x128xf32>
    %cst_57 = arith.constant dense<0.000000e+00> : vector<8x128xf32>
    %95 = tpu.matmul %88, %94, %cst_57 {dimension_numbers = #tpu.dot_dimension_numbers<[1], [0], [0], [1], [0, 0, 1, 1], [], []>} : vector<8x128xf32>, vector<128x128xf32>, vector<8x128xf32> -> vector<8x128xf32>
    %c2200 = arith.constant 2200 : index
    %c0_58 = arith.constant 0 : index
    %96 = vector.load %arg1[%c2200, %c0_58] : memref<2592x128xf32, #tpu.memory_space<vmem>>, vector<128x128xf32>
    %cst_59 = arith.constant dense<0.000000e+00> : vector<8x128xf32>
    %97 = tpu.matmul %93, %96, %cst_59 {dimension_numbers = #tpu.dot_dimension_numbers<[1], [0], [0], [1], [0, 0, 1, 1], [], []>} : vector<8x128xf32>, vector<128x128xf32>, vector<8x128xf32> -> vector<8x128xf32>
    %98 = arith.addf %95, %97 : vector<8x128xf32>
    %c2458 = arith.constant 2458 : index
    %c0_60 = arith.constant 0 : index
    %99 = vector.load %arg1[%c2458, %c0_60] : memref<2592x128xf32, #tpu.memory_space<vmem>>, vector<1x128xf32>
    %100 = vector.broadcast %99 : vector<1x128xf32> to vector<8x128xf32>
    %101 = arith.addf %98, %100 : vector<8x128xf32>
    %cst_61 = arith.constant 0.000000e+00 : f32
    %102 = vector.broadcast %cst_61 : f32 to vector<8x128xf32>
    %103 = arith.maximumf %101, %102 : vector<8x128xf32>
    %c2464 = arith.constant 2464 : index
    %c0_62 = arith.constant 0 : index
    %104 = vector.load %arg1[%c2464, %c0_62] : memref<2592x128xf32, #tpu.memory_space<vmem>>, vector<128x128xf32>
    %cst_63 = arith.constant dense<0.000000e+00> : vector<8x128xf32>
    %105 = tpu.matmul %103, %104, %cst_63 {dimension_numbers = #tpu.dot_dimension_numbers<[1], [0], [0], [1], [0, 0, 1, 1], [], []>} : vector<8x128xf32>, vector<128x128xf32>, vector<8x128xf32> -> vector<8x128xf32>
    %c0_64 = arith.constant 0 : index
    %c0_65 = arith.constant 0 : index
    %106 = vector.load %arg2[%c0_64, %c0_65] : memref<8x128xf32, #tpu.memory_space<vmem>>, vector<8x128xf32>
    tpu.vector_store %arg2[%c0_64, %c0_65], %105 {strides = array<i32>} : memref<8x128xf32, #tpu.memory_space<vmem>>, vector<8x128xf32>,
    %c0_66 = arith.constant 0 : index
    %c0_67 = arith.constant 0 : index
    %107 = vector.load %arg3[%c0_66, %c0_67] : memref<8x128xf32, #tpu.memory_space<vmem>>, vector<8x128xf32>
    tpu.vector_store %arg3[%c0_66, %c0_67], %103 {strides = array<i32>} : memref<8x128xf32, #tpu.memory_space<vmem>>, vector<8x128xf32>,
    return
  }
}

</mosaic_0001>

<llo_original>
// kernel: tpu_custom_call.1
$region0: #{tpu_custom_call.1}
  #allocation0 [shape = 'u32[]', space=smem, size = 0x4, offset = 0x4, fixed_abs, tag = 'smem constant byte address 0x4 - core index']
  #allocation1 [shape = 'u32[72,128]{1,0:T(1,128)}', space=vmem, size = 0x9000, scoped, tag = 'internal scratch']
  %s0 = inlined_call_operand.hbm [shape: f32[8,128], index: 0, kind: input, shape index: {}]
  %s1 = inlined_call_operand.hbm [shape: f32[2592,128], index: 1, kind: input, shape index: {}]
  %s2 = inlined_call_operand.hbm [shape: f32[8,128], index: 2, kind: output, shape index: {0}]
  %s3 = inlined_call_operand.hbm [shape: f32[8,128], index: 3, kind: output, shape index: {1}]
  %4 = xla_tuple %s2, %s3
  %s5 = sld [smem:[#allocation0]]
  $region34: #{tpu_custom_call.1} parent=0
    _
  %s7 = ssub.s32 1, %s5
  %s8 = scalar_select 0, %s7, %s5
  $region1: #{tpu_custom_call.1} parent=0
    #allocation2 [shape = 'u8[4096]{0}', space=vmem, size = 0x1000, scoped, tag = 'input window, operand 0, single buffered']
    #allocation3 [shape = 's32[1]{0}', space=sflag, size = 0x4, scoped, tag = 'scoped memory for tpu_custom_call.1']
    #allocation4 [shape = 's32[1]{0}', space=sflag, size = 0x4, scoped, tag = 'scoped memory for tpu_custom_call.1']
    #allocation5 [shape = 'u8[1327104]{0}', space=vmem, size = 0x144000, scoped, tag = 'input window, operand 1, single buffered']
    #allocation6 [shape = 's32[1]{0}', space=sflag, size = 0x4, scoped, tag = 'scoped memory for tpu_custom_call.1']
    #allocation7 [shape = 'u8[4096]{0}', space=vmem, size = 0x1000, scoped, tag = 'output window, operand 0, single buffered']
    #allocation8 [shape = 'u8[4096]{0}', space=vmem, size = 0x1000, scoped, tag = 'output window, operand 1, single buffered']
    #allocation9 [shape = 's32[1]{0}', space=sflag, size = 0x4, scoped, tag = 'scoped memory for tpu_custom_call.1']
    %9 = vsyncpa [#allocation3], 0
    %10 = vsyncpa [#allocation6], 0
    %11 = vsyncpa [#allocation4], 0
    %12 = vsyncpa [#allocation9], 0
    // Predicated region
    $region2: #{tpu_custom_call.1} parent=1 // pred_check
      _
    $region3: #{tpu_custom_call.1} parent=1 // pred_check_branch
      %14 = sbr.rel (0) target = $region5
    $region4: #{tpu_custom_call.1} parent=1 // pred_region
      %16 = vsyncadd [#allocation3], 0
      %s18 = sshll.u32 %s0, 4
      %s19 = int_to_ptr.hbm [resolvable:$true] %s18
      %s20 = sshll.u32 [#allocation2], 4
      %s21 = int_to_ptr.vmem [resolvable:$true] %s20
      %23 = dma.hbm_to_vmem [thread:$0]  %s19, 128, %s21, [#allocation3]
    $region5: #{tpu_custom_call.1} parent=1 // pred_fallthru
      _
    // Predicated region
    $region6: #{tpu_custom_call.1} parent=1 // pred_check
      _
    $region7: #{tpu_custom_call.1} parent=1 // pred_check_branch
      %25 = sbr.rel (0) target = $region9
    $region8: #{tpu_custom_call.1} parent=1 // pred_region
      %27 = vsyncadd [#allocation6], 0
      %s28 = sshll.u32 %s1, 4
      %s29 = int_to_ptr.hbm [resolvable:$true] %s28
      %s30 = sshll.u32 [#allocation5], 4
      %s31 = int_to_ptr.vmem [resolvable:$true] %s30
      %36 = dma.hbm_to_vmem [thread:$0]  %s29, 41472, %s31, [#allocation6], 128, 128, 8
    $region9: #{tpu_custom_call.1} parent=1 // pred_fallthru
      _
    // Predicated region
    $region10: #{tpu_custom_call.1} parent=1 // pred_check
      _
    $region11: #{tpu_custom_call.1} parent=1 // pred_check_branch
      %38 = sbr.rel (0) target = $region13
    $region12: #{tpu_custom_call.1} parent=1 // pred_region
      %40 = dma.done [#allocation3], 128
    $region13: #{tpu_custom_call.1} parent=1 // pred_fallthru
      _
    // Predicated region
    $region14: #{tpu_custom_call.1} parent=1 // pred_check
      _
    $region15: #{tpu_custom_call.1} parent=1 // pred_check_branch
      %42 = sbr.rel (0) target = $region17
    $region16: #{tpu_custom_call.1} parent=1 // pred_region
      %44 = dma.done [#allocation6], 41472
    $region17: #{tpu_custom_call.1} parent=1 // pred_fallthru
      _
    %v45 = vld [vmem:[#allocation2] sm:$0xff]
    %v46 = vld [vmem:[#allocation5] sm:$0xff]
    %v47 = vld [vmem:[#allocation5 + $0x8] sm:$0xff]
    %v48 = vld [vmem:[#allocation5 + $0x10] sm:$0xff]
    %v49 = vld [vmem:[#allocation5 + $0x18] sm:$0xff]
    %v50 = vld [vmem:[#allocation5 + $0x20] sm:$0xff]
    %v51 = vld [vmem:[#allocation5 + $0x28] sm:$0xff]
    %v52 = vld [vmem:[#allocation5 + $0x30] sm:$0xff]
    %v53 = vld [vmem:[#allocation5 + $0x38] sm:$0xff]
    %v54 = vld [vmem:[#allocation5 + $0x40] sm:$0xff]
    %v55 = vld [vmem:[#allocation5 + $0x48] sm:$0xff]
    %v56 = vld [vmem:[#allocation5 + $0x50] sm:$0xff]
    %v57 = vld [vmem:[#allocation5 + $0x58] sm:$0xff]
    %v58 = vld [vmem:[#allocation5 + $0x60] sm:$0xff]
    %v59 = vld [vmem:[#allocation5 + $0x68] sm:$0xff]
    %v60 = vld [vmem:[#allocation5 + $0x70] sm:$0xff]
    %v61 = vld [vmem:[#allocation5 + $0x78] sm:$0xff]
    %v62 = vld [vmem:[#allocation5 + $0x280] sm:$0x1]
    %v63 = vperm.slane %v62, 0
    %64 = vmatpush.msra.mxu0 %v61
    %65 = vmatpush.msra.mxu0 %v60
    %66 = vmatpush.msra.mxu0 %v59
    %67 = vmatpush.msra.mxu0 %v58
    %68 = vmatpush.msra.mxu0 %v57
    %69 = vmatpush.msra.mxu0 %v56
    %70 = vmatpush.msra.mxu0 %v55
    %71 = vmatpush.msra.mxu0 %v54
    %72 = vmatpush.msra.mxu0 %v53
    %73 = vmatpush.msra.mxu0 %v52
    %74 = vmatpush.msra.mxu0 %v51
    %75 = vmatpush.msra.mxu0 %v50
    %76 = vmatpush.msra.mxu0 %v49
    %77 = vmatpush.msra.mxu0 %v48
    %78 = vmatpush.msra.mxu0 %v47
    %79 = vmatpush.msra.mxu0 %v46
    %80 = vmatmul.f32.gmra.mxu0 %v45
    %v81 = vpop.f32.mrf.mxu0
    %v82 = vadd.f32 %v63, %v81
    %83 = vdwg.mxu0
    %v84 = vmax.f32 %v82, 0.0
    %v85 = vld [vmem:[#allocation5 + $0x80] sm:$0xff]
    %v86 = vld [vmem:[#allocation5 + $0x88] sm:$0xff]
    %v87 = vld [vmem:[#allocation5 + $0x90] sm:$0xff]
    %v88 = vld [vmem:[#allocation5 + $0x98] sm:$0xff]
    %v89 = vld [vmem:[#allocation5 + $0xa0] sm:$0xff]
    %v90 = vld [vmem:[#allocation5 + $0xa8] sm:$0xff]
    %v91 = vld [vmem:[#allocation5 + $0xb0] sm:$0xff]
    %v92 = vld [vmem:[#allocation5 + $0xb8] sm:$0xff]
    %v93 = vld [vmem:[#allocation5 + $0xc0] sm:$0xff]
    %v94 = vld [vmem:[#allocation5 + $0xc8] sm:$0xff]
    %v95 = vld [vmem:[#allocation5 + $0xd0] sm:$0xff]
    %v96 = vld [vmem:[#allocation5 + $0xd8] sm:$0xff]
    %v97 = vld [vmem:[#allocation5 + $0xe0] sm:$0xff]
    %v98 = vld [vmem:[#allocation5 + $0xe8] sm:$0xff]
    %v99 = vld [vmem:[#allocation5 + $0xf0] sm:$0xff]
    %v100 = vld [vmem:[#allocation5 + $0xf8] sm:$0xff]
    %v101 = vld [vmem:[#allocation5 + $0x281] sm:$0x1]
    %v102 = vperm.slane %v101, 0
    %103 = vmatpush.msra.mxu0 %v100
    %104 = vmatpush.msra.mxu0 %v99
    %105 = vmatpush.msra.mxu0 %v98
    %106 = vmatpush.msra.mxu0 %v97
    %107 = vmatpush.msra.mxu0 %v96
    %108 = vmatpush.msra.mxu0 %v95
    %109 = vmatpush.msra.mxu0 %v94
    %110 = vmatpush.msra.mxu0 %v93
    %111 = vmatpush.msra.mxu0 %v92
    %112 = vmatpush.msra.mxu0 %v91
    %113 = vmatpush.msra.mxu0 %v90
    %114 = vmatpush.msra.mxu0 %v89
    %115 = vmatpush.msra.mxu0 %v88
    %116 = vmatpush.msra.mxu0 %v87
    %117 = vmatpush.msra.mxu0 %v86
    %118 = vmatpush.msra.mxu0 %v85
    %119 = vmatmul.f32.gmra.mxu0 %v84
    %v120 = vpop.f32.mrf.mxu0
    %v121 = vadd.f32 %v102, %v120
    %122 = vdwg.mxu0
    %v123 = vld [vmem:[#allocation5 + $0x200] sm:$0xff]
    %v124 = vld [vmem:[#allocation5 + $0x208] sm:$0xff]
    %v125 = vld [vmem:[#allocation5 + $0x210] sm:$0xff]
    %v126 = vld [vmem:[#allocation5 + $0x218] sm:$0xff]
    %v127 = vld [vmem:[#allocation5 + $0x220] sm:$0xff]
    %v128 = vld [vmem:[#allocation5 + $0x228] sm:$0xff]
    %v129 = vld [vmem:[#allocation5 + $0x230] sm:$0xff]
    %v130 = vld [vmem:[#allocation5 + $0x238] sm:$0xff]
    %v131 = vld [vmem:[#allocation5 + $0x240] sm:$0xff]
    %v132 = vld [vmem:[#allocation5 + $0x248] sm:$0xff]
    %v133 = vld [vmem:[#allocation5 + $0x250] sm:$0xff]
    %v134 = vld [vmem:[#allocation5 + $0x258] sm:$0xff]
    %v135 = vld [vmem:[#allocation5 + $0x260] sm:$0xff]
    %v136 = vld [vmem:[#allocation5 + $0x268] sm:$0xff]
    %v137 = vld [vmem:[#allocation5 + $0x270] sm:$0xff]
    %v138 = vld [vmem:[#allocation5 + $0x278] sm:$0xff]
    %v139 = vld [vmem:[#allocation5 + $0x283] sm:$0x1]
    %v140 = vperm.slane %v139, 0
    %141 = vmatpush.msra.mxu0 %v138
    %142 = vmatpush.msra.mxu0 %v137
    %143 = vmatpush.msra.mxu0 %v136
    %144 = vmatpush.msra.mxu0 %v135
    %145 = vmatpush.msra.mxu0 %v134
    %146 = vmatpush.msra.mxu0 %v133
    %147 = vmatpush.msra.mxu0 %v132
    %148 = vmatpush.msra.mxu0 %v131
    %149 = vmatpush.msra.mxu0 %v130
    %150 = vmatpush.msra.mxu0 %v129
    %151 = vmatpush.msra.mxu0 %v128
    %152 = vmatpush.msra.mxu0 %v127
    %153 = vmatpush.msra.mxu0 %v126
    %154 = vmatpush.msra.mxu0 %v125
    %155 = vmatpush.msra.mxu0 %v124
    %156 = vmatpush.msra.mxu0 %v123
    %157 = vmatmul.f32.gmra.mxu0 %v45
    %v158 = vpop.f32.mrf.mxu0
    %v159 = vadd.f32 %v140, %v158
    %160 = vdwg.mxu0
    %v161 = vld [vmem:[#allocation5 + $0x100] sm:$0xff]
    %v162 = vld [vmem:[#allocation5 + $0x108] sm:$0xff]
    %v163 = vld [vmem:[#allocation5 + $0x110] sm:$0xff]
    %v164 = vld [vmem:[#allocation5 + $0x118] sm:$0xff]
    %v165 = vld [vmem:[#allocation5 + $0x120] sm:$0xff]
    %v166 = vld [vmem:[#allocation5 + $0x128] sm:$0xff]
    %v167 = vld [vmem:[#allocation5 + $0x130] sm:$0xff]
    %v168 = vld [vmem:[#allocation5 + $0x138] sm:$0xff]
    %v169 = vld [vmem:[#allocation5 + $0x140] sm:$0xff]
    %v170 = vld [vmem:[#allocation5 + $0x148] sm:$0xff]
    %v171 = vld [vmem:[#allocation5 + $0x150] sm:$0xff]
    %v172 = vld [vmem:[#allocation5 + $0x158] sm:$0xff]
    %v173 = vld [vmem:[#allocation5 + $0x160] sm:$0xff]
    %v174 = vld [vmem:[#allocation5 + $0x168] sm:$0xff]
    %v175 = vld [vmem:[#allocation5 + $0x170] sm:$0xff]
    %v176 = vld [vmem:[#allocation5 + $0x178] sm:$0xff]
    %v177 = vld [vmem:[#allocation5 + $0x180] sm:$0xff]
    %v178 = vld [vmem:[#allocation5 + $0x188] sm:$0xff]
    %v179 = vld [vmem:[#allocation5 + $0x190] sm:$0xff]
    %v180 = vld [vmem:[#allocation5 + $0x198] sm:$0xff]
    %v181 = vld [vmem:[#allocation5 + $0x1a0] sm:$0xff]
    %v182 = vld [vmem:[#allocation5 + $0x1a8] sm:$0xff]
    %v183 = vld [vmem:[#allocation5 + $0x1b0] sm:$0xff]
    %v184 = vld [vmem:[#allocation5 + $0x1b8] sm:$0xff]
    %v185 = vld [vmem:[#allocation5 + $0x1c0] sm:$0xff]
    %v186 = vld [vmem:[#allocation5 + $0x1c8] sm:$0xff]
    %v187 = vld [vmem:[#allocation5 + $0x1d0] sm:$0xff]
    %v188 = vld [vmem:[#allocation5 + $0x1d8] sm:$0xff]
    %v189 = vld [vmem:[#allocation5 + $0x1e0] sm:$0xff]
    %v190 = vld [vmem:[#allocation5 + $0x1e8] sm:$0xff]
    %v191 = vld [vmem:[#allocation5 + $0x1f0] sm:$0xff]
    %v192 = vld [vmem:[#allocation5 + $0x1f8] sm:$0xff]
    %193 = vmatpush.msra.mxu0 %v192
    %194 = vmatpush.msra.mxu0 %v191
    %195 = vmatpush.msra.mxu0 %v190
    %196 = vmatpush.msra.mxu0 %v189
    %197 = vmatpush.msra.mxu0 %v188
    %198 = vmatpush.msra.mxu0 %v187
    %199 = vmatpush.msra.mxu0 %v186
    %200 = vmatpush.msra.mxu0 %v185
    %201 = vmatpush.msra.mxu0 %v184
    %202 = vmatpush.msra.mxu0 %v183
    %203 = vmatpush.msra.mxu0 %v182
    %204 = vmatpush.msra.mxu0 %v181
    %205 = vmatpush.msra.mxu0 %v180
    %206 = vmatpush.msra.mxu0 %v179
    %207 = vmatpush.msra.mxu0 %v178
    %208 = vmatpush.msra.mxu0 %v177
    %209 = vmatmul.f32.gmra.mxu0 %v159
    %v210 = vpop.f32.mrf.mxu0
    %v211 = vadd.f32 0.0, %v210
    %212 = vdwg.mxu0
    %213 = vmatpush.msra.mxu0 %v176
    %214 = vmatpush.msra.mxu0 %v175
    %215 = vmatpush.msra.mxu0 %v174
    %216 = vmatpush.msra.mxu0 %v173
    %217 = vmatpush.msra.mxu0 %v172
    %218 = vmatpush.msra.mxu0 %v171
    %219 = vmatpush.msra.mxu0 %v170
    %220 = vmatpush.msra.mxu0 %v169
    %221 = vmatpush.msra.mxu0 %v168
    %222 = vmatpush.msra.mxu0 %v167
    %223 = vmatpush.msra.mxu0 %v166
    %224 = vmatpush.msra.mxu0 %v165
    %225 = vmatpush.msra.mxu0 %v164
    %226 = vmatpush.msra.mxu0 %v163
    %227 = vmatpush.msra.mxu0 %v162
    %228 = vmatpush.msra.mxu0 %v161
    %229 = vmatmul.f32.gmra.mxu0 %v121
    %v230 = vpop.f32.mrf.mxu0
    %v231 = vadd.f32 %v211, %v230
    %232 = vdwg.mxu0
    %v233 = vld [vmem:[#allocation5 + $0x282] sm:$0x1]
    %v234 = vperm.slane %v233, 0
    %v235 = vadd.f32 %v231, %v234
    %v236 = vmax.f32 %v235, 0.0
    %v237 = vld [vmem:[#allocation5 + $0x288] sm:$0xff]
    %v238 = vld [vmem:[#allocation5 + $0x290] sm:$0xff]
    %v239 = vld [vmem:[#allocation5 + $0x298] sm:$0xff]
    %v240 = vld [vmem:[#allocation5 + $0x2a0] sm:$0xff]
    %v241 = vld [vmem:[#allocation5 + $0x2a8] sm:$0xff]
    %v242 = vld [vmem:[#allocation5 + $0x2b0] sm:$0xff]
    %v243 = vld [vmem:[#allocation5 + $0x2b8] sm:$0xff]
    %v244 = vld [vmem:[#allocation5 + $0x2c0] sm:$0xff]
    %v245 = vld [vmem:[#allocation5 + $0x2c8] sm:$0xff]
    %v246 = vld [vmem:[#allocation5 + $0x2d0] sm:$0xff]
    %v247 = vld [vmem:[#allocation5 + $0x2d8] sm:$0xff]
    %v248 = vld [vmem:[#allocation5 + $0x2e0] sm:$0xff]
    %v249 = vld [vmem:[#allocation5 + $0x2e8] sm:$0xff]
    %v250 = vld [vmem:[#allocation5 + $0x2f0] sm:$0xff]
    %v251 = vld [vmem:[#allocation5 + $0x2f8] sm:$0xff]
    %v252 = vld [vmem:[#allocation5 + $0x300] sm:$0xff]
    %v253 = vld [vmem:[#allocation5 + $0x488] sm:$0x1]
    %v254 = vperm.slane %v253, 0
    %255 = vmatpush.msra.mxu0 %v252
    %256 = vmatpush.msra.mxu0 %v251
    %257 = vmatpush.msra.mxu0 %v250
    %258 = vmatpush.msra.mxu0 %v249
    %259 = vmatpush.msra.mxu0 %v248
    %260 = vmatpush.msra.mxu0 %v247
    %261 = vmatpush.msra.mxu0 %v246
    %262 = vmatpush.msra.mxu0 %v245
    %263 = vmatpush.msra.mxu0 %v244
    %264 = vmatpush.msra.mxu0 %v243
    %265 = vmatpush.msra.mxu0 %v242
    %266 = vmatpush.msra.mxu0 %v241
    %267 = vmatpush.msra.mxu0 %v240
    %268 = vmatpush.msra.mxu0 %v239
    %269 = vmatpush.msra.mxu0 %v238
    %270 = vmatpush.msra.mxu0 %v237
    %271 = vmatmul.f32.gmra.mxu0 %v236
    %v272 = vpop.f32.mrf.mxu0
    %v273 = vadd.f32 %v254, %v272
    %274 = vdwg.mxu0
    %v275 = vmax.f32 %v273, 0.0
    %v276 = vld [vmem:[#allocation5 + $0x308] sm:$0xff]
    %v277 = vld [vmem:[#allocation5 + $0x310] sm:$0xff]
    %v278 = vld [vmem:[#allocation5 + $0x318] sm:$0xff]
    %v279 = vld [vmem:[#allocation5 + $0x320] sm:$0xff]
    %v280 = vld [vmem:[#allocation5 + $0x328] sm:$0xff]
    %v281 = vld [vmem:[#allocation5 + $0x330] sm:$0xff]
    %v282 = vld [vmem:[#allocation5 + $0x338] sm:$0xff]
    %v283 = vld [vmem:[#allocation5 + $0x340] sm:$0xff]
    %v284 = vld [vmem:[#allocation5 + $0x348] sm:$0xff]
    %v285 = vld [vmem:[#allocation5 + $0x350] sm:$0xff]
    %v286 = vld [vmem:[#allocation5 + $0x358] sm:$0xff]
    %v287 = vld [vmem:[#allocation5 + $0x360] sm:$0xff]
    %v288 = vld [vmem:[#allocation5 + $0x368] sm:$0xff]
    %v289 = vld [vmem:[#allocation5 + $0x370] sm:$0xff]
    %v290 = vld [vmem:[#allocation5 + $0x378] sm:$0xff]
    %v291 = vld [vmem:[#allocation5 + $0x380] sm:$0xff]
    %v292 = vld [vmem:[#allocation5 + $0x489] sm:$0x1]
    %v293 = vperm.slane %v292, 0
    %294 = vmatpush.msra.mxu0 %v291
    %295 = vmatpush.msra.mxu0 %v290
    %296 = vmatpush.msra.mxu0 %v289
    %297 = vmatpush.msra.mxu0 %v288
    %298 = vmatpush.msra.mxu0 %v287
    %299 = vmatpush.msra.mxu0 %v286
    %300 = vmatpush.msra.mxu0 %v285
    %301 = vmatpush.msra.mxu0 %v284
    %302 = vmatpush.msra.mxu0 %v283
    %303 = vmatpush.msra.mxu0 %v282
    %304 = vmatpush.msra.mxu0 %v281
    %305 = vmatpush.msra.mxu0 %v280
    %306 = vmatpush.msra.mxu0 %v279
    %307 = vmatpush.msra.mxu0 %v278
    %308 = vmatpush.msra.mxu0 %v277
    %309 = vmatpush.msra.mxu0 %v276
    %310 = vmatmul.f32.gmra.mxu0 %v275
    %v311 = vpop.f32.mrf.mxu0
    %v312 = vadd.f32 %v293, %v311
    %313 = vdwg.mxu0
    %v314 = vld [vmem:[#allocation5 + $0x388] sm:$0xff]
    %v315 = vld [vmem:[#allocation5 + $0x390] sm:$0xff]
    %v316 = vld [vmem:[#allocation5 + $0x398] sm:$0xff]
    %v317 = vld [vmem:[#allocation5 + $0x3a0] sm:$0xff]
    %v318 = vld [vmem:[#allocation5 + $0x3a8] sm:$0xff]
    %v319 = vld [vmem:[#allocation5 + $0x3b0] sm:$0xff]
    %v320 = vld [vmem:[#allocation5 + $0x3b8] sm:$0xff]
    %v321 = vld [vmem:[#allocation5 + $0x3c0] sm:$0xff]
    %v322 = vld [vmem:[#allocation5 + $0x3c8] sm:$0xff]
    %v323 = vld [vmem:[#allocation5 + $0x3d0] sm:$0xff]
    %v324 = vld [vmem:[#allocation5 + $0x3d8] sm:$0xff]
    %v325 = vld [vmem:[#allocation5 + $0x3e0] sm:$0xff]
    %v326 = vld [vmem:[#allocation5 + $0x3e8] sm:$0xff]
    %v327 = vld [vmem:[#allocation5 + $0x3f0] sm:$0xff]
    %v328 = vld [vmem:[#allocation5 + $0x3f8] sm:$0xff]
    %v329 = vld [vmem:[#allocation5 + $0x400] sm:$0xff]
    %v330 = vld [vmem:[#allocation5 + $0x408] sm:$0xff]
    %v331 = vld [vmem:[#allocation5 + $0x410] sm:$0xff]
    %v332 = vld [vmem:[#allocation5 + $0x418] sm:$0xff]
    %v333 = vld [vmem:[#allocation5 + $0x420] sm:$0xff]
    %v334 = vld [vmem:[#allocation5 + $0x428] sm:$0xff]
    %v335 = vld [vmem:[#allocation5 + $0x430] sm:$0xff]
    %v336 = vld [vmem:[#allocation5 + $0x438] sm:$0xff]
    %v337 = vld [vmem:[#allocation5 + $0x440] sm:$0xff]
    %v338 = vld [vmem:[#allocation5 + $0x448] sm:$0xff]
    %v339 = vld [vmem:[#allocation5 + $0x450] sm:$0xff]
    %v340 = vld [vmem:[#allocation5 + $0x458] sm:$0xff]
    %v341 = vld [vmem:[#allocation5 + $0x460] sm:$0xff]
    %v342 = vld [vmem:[#allocation5 + $0x468] sm:$0xff]
    %v343 = vld [vmem:[#allocation5 + $0x470] sm:$0xff]
    %v344 = vld [vmem:[#allocation5 + $0x478] sm:$0xff]
    %v345 = vld [vmem:[#allocation5 + $0x480] sm:$0xff]
    %346 = vmatpush.msra.mxu0 %v345
    %347 = vmatpush.msra.mxu0 %v344
    %348 = vmatpush.msra.mxu0 %v343
    %349 = vmatpush.msra.mxu0 %v342
    %350 = vmatpush.msra.mxu0 %v341
    %351 = vmatpush.msra.mxu0 %v340
    %352 = vmatpush.msra.mxu0 %v339
    %353 = vmatpush.msra.mxu0 %v338
    %354 = vmatpush.msra.mxu0 %v337
    %355 = vmatpush.msra.mxu0 %v336
    %356 = vmatpush.msra.mxu0 %v335
    %357 = vmatpush.msra.mxu0 %v334
    %358 = vmatpush.msra.mxu0 %v333
    %359 = vmatpush.msra.mxu0 %v332
    %360 = vmatpush.msra.mxu0 %v331
    %361 = vmatpush.msra.mxu0 %v330
    %362 = vmatmul.f32.gmra.mxu0 %v236
    %v363 = vpop.f32.mrf.mxu0
    %v364 = vadd.f32 0.0, %v363
    %365 = vdwg.mxu0
    %366 = vmatpush.msra.mxu0 %v329
    %367 = vmatpush.msra.mxu0 %v328
    %368 = vmatpush.msra.mxu0 %v327
    %369 = vmatpush.msra.mxu0 %v326
    %370 = vmatpush.msra.mxu0 %v325
    %371 = vmatpush.msra.mxu0 %v324
    %372 = vmatpush.msra.mxu0 %v323
    %373 = vmatpush.msra.mxu0 %v322
    %374 = vmatpush.msra.mxu0 %v321
    %375 = vmatpush.msra.mxu0 %v320
    %376 = vmatpush.msra.mxu0 %v319
    %377 = vmatpush.msra.mxu0 %v318
    %378 = vmatpush.msra.mxu0 %v317
    %379 = vmatpush.msra.mxu0 %v316
    %380 = vmatpush.msra.mxu0 %v315
    %381 = vmatpush.msra.mxu0 %v314
    %382 = vmatmul.f32.gmra.mxu0 %v312
    %v383 = vpop.f32.mrf.mxu0
    %v384 = vadd.f32 %v364, %v383
    %385 = vdwg.mxu0
    %v386 = vld [vmem:[#allocation5 + $0x48a] sm:$0x1]
    %v387 = vperm.slane %v386, 0
    %v388 = vadd.f32 %v384, %v387
    %v389 = vmax.f32 %v388, 0.0
    %v390 = vld [vmem:[#allocation5 + $0x490] sm:$0xff]
    %v391 = vld [vmem:[#allocation5 + $0x498] sm:$0xff]
    %v392 = vld [vmem:[#allocation5 + $0x4a0] sm:$0xff]
    %v393 = vld [vmem:[#allocation5 + $0x4a8] sm:$0xff]
    %v394 = vld [vmem:[#allocation5 + $0x4b0] sm:$0xff]
    %v395 = vld [vmem:[#allocation5 + $0x4b8] sm:$0xff]
    %v396 = vld [vmem:[#allocation5 + $0x4c0] sm:$0xff]
    %v397 = vld [vmem:[#allocation5 + $0x4c8] sm:$0xff]
    %v398 = vld [vmem:[#allocation5 + $0x4d0] sm:$0xff]
    %v399 = vld [vmem:[#allocation5 + $0x4d8] sm:$0xff]
    %v400 = vld [vmem:[#allocation5 + $0x4e0] sm:$0xff]
    %v401 = vld [vmem:[#allocation5 + $0x4e8] sm:$0xff]
    %v402 = vld [vmem:[#allocation5 + $0x4f0] sm:$0xff]
    %v403 = vld [vmem:[#allocation5 + $0x4f8] sm:$0xff]
    %v404 = vld [vmem:[#allocation5 + $0x500] sm:$0xff]
    %v405 = vld [vmem:[#allocation5 + $0x508] sm:$0xff]
    %v406 = vld [vmem:[#allocation5 + $0x710] sm:$0x1]
    %v407 = vperm.slane %v406, 0
    %408 = vmatpush.msra.mxu0 %v405
    %409 = vmatpush.msra.mxu0 %v404
    %410 = vmatpush.msra.mxu0 %v403
    %411 = vmatpush.msra.mxu0 %v402
    %412 = vmatpush.msra.mxu0 %v401
    %413 = vmatpush.msra.mxu0 %v400
    %414 = vmatpush.msra.mxu0 %v399
    %415 = vmatpush.msra.mxu0 %v398
    %416 = vmatpush.msra.mxu0 %v397
    %417 = vmatpush.msra.mxu0 %v396
    %418 = vmatpush.msra.mxu0 %v395
    %419 = vmatpush.msra.mxu0 %v394
    %420 = vmatpush.msra.mxu0 %v393
    %421 = vmatpush.msra.mxu0 %v392
    %422 = vmatpush.msra.mxu0 %v391
    %423 = vmatpush.msra.mxu0 %v390
    %424 = vmatmul.f32.gmra.mxu0 %v389
    %v425 = vpop.f32.mrf.mxu0
    %v426 = vadd.f32 %v407, %v425
    %427 = vdwg.mxu0
    %v428 = vmax.f32 %v426, 0.0
    %v429 = vld [vmem:[#allocation5 + $0x510] sm:$0xff]
    %v430 = vld [vmem:[#allocation5 + $0x518] sm:$0xff]
    %v431 = vld [vmem:[#allocation5 + $0x520] sm:$0xff]
    %v432 = vld [vmem:[#allocation5 + $0x528] sm:$0xff]
    %v433 = vld [vmem:[#allocation5 + $0x530] sm:$0xff]
    %v434 = vld [vmem:[#allocation5 + $0x538] sm:$0xff]
    %v435 = vld [vmem:[#allocation5 + $0x540] sm:$0xff]
    %v436 = vld [vmem:[#allocation5 + $0x548] sm:$0xff]
    %v437 = vld [vmem:[#allocation5 + $0x550] sm:$0xff]
    %v438 = vld [vmem:[#allocation5 + $0x558] sm:$0xff]
    %v439 = vld [vmem:[#allocation5 + $0x560] sm:$0xff]
    %v440 = vld [vmem:[#allocation5 + $0x568] sm:$0xff]
    %v441 = vld [vmem:[#allocation5 + $0x570] sm:$0xff]
    %v442 = vld [vmem:[#allocation5 + $0x578] sm:$0xff]
    %v443 = vld [vmem:[#allocation5 + $0x580] sm:$0xff]
    %v444 = vld [vmem:[#allocation5 + $0x588] sm:$0xff]
    %v445 = vld [vmem:[#allocation5 + $0x711] sm:$0x1]
    %v446 = vperm.slane %v445, 0
    %447 = vmatpush.msra.mxu0 %v444
    %448 = vmatpush.msra.mxu0 %v443
    %449 = vmatpush.msra.mxu0 %v442
    %450 = vmatpush.msra.mxu0 %v441
    %451 = vmatpush.msra.mxu0 %v440
    %452 = vmatpush.msra.mxu0 %v439
    %453 = vmatpush.msra.mxu0 %v438
    %454 = vmatpush.msra.mxu0 %v437
    %455 = vmatpush.msra.mxu0 %v436
    %456 = vmatpush.msra.mxu0 %v435
    %457 = vmatpush.msra.mxu0 %v434
    %458 = vmatpush.msra.mxu0 %v433
    %459 = vmatpush.msra.mxu0 %v432
    %460 = vmatpush.msra.mxu0 %v431
    %461 = vmatpush.msra.mxu0 %v430
    %462 = vmatpush.msra.mxu0 %v429
    %463 = vmatmul.f32.gmra.mxu0 %v428
    %v464 = vpop.f32.mrf.mxu0
    %v465 = vadd.f32 %v446, %v464
    %466 = vdwg.mxu0
    %v467 = vld [vmem:[#allocation5 + $0x690] sm:$0xff]
    %v468 = vld [vmem:[#allocation5 + $0x698] sm:$0xff]
    %v469 = vld [vmem:[#allocation5 + $0x6a0] sm:$0xff]
    %v470 = vld [vmem:[#allocation5 + $0x6a8] sm:$0xff]
    %v471 = vld [vmem:[#allocation5 + $0x6b0] sm:$0xff]
    %v472 = vld [vmem:[#allocation5 + $0x6b8] sm:$0xff]
    %v473 = vld [vmem:[#allocation5 + $0x6c0] sm:$0xff]
    %v474 = vld [vmem:[#allocation5 + $0x6c8] sm:$0xff]
    %v475 = vld [vmem:[#allocation5 + $0x6d0] sm:$0xff]
    %v476 = vld [vmem:[#allocation5 + $0x6d8] sm:$0xff]
    %v477 = vld [vmem:[#allocation5 + $0x6e0] sm:$0xff]
    %v478 = vld [vmem:[#allocation5 + $0x6e8] sm:$0xff]
    %v479 = vld [vmem:[#allocation5 + $0x6f0] sm:$0xff]
    %v480 = vld [vmem:[#allocation5 + $0x6f8] sm:$0xff]
    %v481 = vld [vmem:[#allocation5 + $0x700] sm:$0xff]
    %v482 = vld [vmem:[#allocation5 + $0x708] sm:$0xff]
    %v483 = vld [vmem:[#allocation5 + $0x713] sm:$0x1]
    %v484 = vperm.slane %v483, 0
    %485 = vmatpush.msra.mxu0 %v482
    %486 = vmatpush.msra.mxu0 %v481
    %487 = vmatpush.msra.mxu0 %v480
    %488 = vmatpush.msra.mxu0 %v479
    %489 = vmatpush.msra.mxu0 %v478
    %490 = vmatpush.msra.mxu0 %v477
    %491 = vmatpush.msra.mxu0 %v476
    %492 = vmatpush.msra.mxu0 %v475
    %493 = vmatpush.msra.mxu0 %v474
    %494 = vmatpush.msra.mxu0 %v473
    %495 = vmatpush.msra.mxu0 %v472
    %496 = vmatpush.msra.mxu0 %v471
    %497 = vmatpush.msra.mxu0 %v470
    %498 = vmatpush.msra.mxu0 %v469
    %499 = vmatpush.msra.mxu0 %v468
    %500 = vmatpush.msra.mxu0 %v467
    %501 = vmatmul.f32.gmra.mxu0 %v389
    %v502 = vpop.f32.mrf.mxu0
    %v503 = vadd.f32 %v484, %v502
    %504 = vdwg.mxu0
    %v505 = vld [vmem:[#allocation5 + $0x590] sm:$0xff]
    %v506 = vld [vmem:[#allocation5 + $0x598] sm:$0xff]
    %v507 = vld [vmem:[#allocation5 + $0x5a0] sm:$0xff]
    %v508 = vld [vmem:[#allocation5 + $0x5a8] sm:$0xff]
    %v509 = vld [vmem:[#allocation5 + $0x5b0] sm:$0xff]
    %v510 = vld [vmem:[#allocation5 + $0x5b8] sm:$0xff]
    %v511 = vld [vmem:[#allocation5 + $0x5c0] sm:$0xff]
    %v512 = vld [vmem:[#allocation5 + $0x5c8] sm:$0xff]
    %v513 = vld [vmem:[#allocation5 + $0x5d0] sm:$0xff]
    %v514 = vld [vmem:[#allocation5 + $0x5d8] sm:$0xff]
    %v515 = vld [vmem:[#allocation5 + $0x5e0] sm:$0xff]
    %v516 = vld [vmem:[#allocation5 + $0x5e8] sm:$0xff]
    %v517 = vld [vmem:[#allocation5 + $0x5f0] sm:$0xff]
    %v518 = vld [vmem:[#allocation5 + $0x5f8] sm:$0xff]
    %v519 = vld [vmem:[#allocation5 + $0x600] sm:$0xff]
    %v520 = vld [vmem:[#allocation5 + $0x608] sm:$0xff]
    %v521 = vld [vmem:[#allocation5 + $0x610] sm:$0xff]
    %v522 = vld [vmem:[#allocation5 + $0x618] sm:$0xff]
    %v523 = vld [vmem:[#allocation5 + $0x620] sm:$0xff]
    %v524 = vld [vmem:[#allocation5 + $0x628] sm:$0xff]
    %v525 = vld [vmem:[#allocation5 + $0x630] sm:$0xff]
    %v526 = vld [vmem:[#allocation5 + $0x638] sm:$0xff]
    %v527 = vld [vmem:[#allocation5 + $0x640] sm:$0xff]
    %v528 = vld [vmem:[#allocation5 + $0x648] sm:$0xff]
    %v529 = vld [vmem:[#allocation5 + $0x650] sm:$0xff]
    %v530 = vld [vmem:[#allocation5 + $0x658] sm:$0xff]
    %v531 = vld [vmem:[#allocation5 + $0x660] sm:$0xff]
    %v532 = vld [vmem:[#allocation5 + $0x668] sm:$0xff]
    %v533 = vld [vmem:[#allocation5 + $0x670] sm:$0xff]
    %v534 = vld [vmem:[#allocation5 + $0x678] sm:$0xff]
    %v535 = vld [vmem:[#allocation5 + $0x680] sm:$0xff]
    %v536 = vld [vmem:[#allocation5 + $0x688] sm:$0xff]
    %537 = vmatpush.msra.mxu0 %v536
    %538 = vmatpush.msra.mxu0 %v535
    %539 = vmatpush.msra.mxu0 %v534
    %540 = vmatpush.msra.mxu0 %v533
    %541 = vmatpush.msra.mxu0 %v532
    %542 = vmatpush.msra.mxu0 %v531
    %543 = vmatpush.msra.mxu0 %v530
    %544 = vmatpush.msra.mxu0 %v529
    %545 = vmatpush.msra.mxu0 %v528
    %546 = vmatpush.msra.mxu0 %v527
    %547 = vmatpush.msra.mxu0 %v526
    %548 = vmatpush.msra.mxu0 %v525
    %549 = vmatpush.msra.mxu0 %v524
    %550 = vmatpush.msra.mxu0 %v523
    %551 = vmatpush.msra.mxu0 %v522
    %552 = vmatpush.msra.mxu0 %v521
    %553 = vmatmul.f32.gmra.mxu0 %v503
    %v554 = vpop.f32.mrf.mxu0
    %v555 = vadd.f32 0.0, %v554
    %556 = vdwg.mxu0
    %557 = vmatpush.msra.mxu0 %v520
    %558 = vmatpush.msra.mxu0 %v519
    %559 = vmatpush.msra.mxu0 %v518
    %560 = vmatpush.msra.mxu0 %v517
    %561 = vmatpush.msra.mxu0 %v516
    %562 = vmatpush.msra.mxu0 %v515
    %563 = vmatpush.msra.mxu0 %v514
    %564 = vmatpush.msra.mxu0 %v513
    %565 = vmatpush.msra.mxu0 %v512
    %566 = vmatpush.msra.mxu0 %v511
    %567 = vmatpush.msra.mxu0 %v510
    %568 = vmatpush.msra.mxu0 %v509
    %569 = vmatpush.msra.mxu0 %v508
    %570 = vmatpush.msra.mxu0 %v507
    %571 = vmatpush.msra.mxu0 %v506
    %572 = vmatpush.msra.mxu0 %v505
    %573 = vmatmul.f32.gmra.mxu0 %v465
    %v574 = vpop.f32.mrf.mxu0
    %v575 = vadd.f32 %v555, %v574
    %576 = vdwg.mxu0
    %v577 = vld [vmem:[#allocation5 + $0x712] sm:$0x1]
    %v578 = vperm.slane %v577, 0
    %v579 = vadd.f32 %v575, %v578
    %v580 = vmax.f32 %v579, 0.0
    %v581 = vld [vmem:[#allocation5 + $0x718] sm:$0xff]
    %v582 = vld [vmem:[#allocation5 + $0x720] sm:$0xff]
    %v583 = vld [vmem:[#allocation5 + $0x728] sm:$0xff]
    %v584 = vld [vmem:[#allocation5 + $0x730] sm:$0xff]
    %v585 = vld [vmem:[#allocation5 + $0x738] sm:$0xff]
    %v586 = vld [vmem:[#allocation5 + $0x740] sm:$0xff]
    %v587 = vld [vmem:[#allocation5 + $0x748] sm:$0xff]
    %v588 = vld [vmem:[#allocation5 + $0x750] sm:$0xff]
    %v589 = vld [vmem:[#allocation5 + $0x758] sm:$0xff]
    %v590 = vld [vmem:[#allocation5 + $0x760] sm:$0xff]
    %v591 = vld [vmem:[#allocation5 + $0x768] sm:$0xff]
    %v592 = vld [vmem:[#allocation5 + $0x770] sm:$0xff]
    %v593 = vld [vmem:[#allocation5 + $0x778] sm:$0xff]
    %v594 = vld [vmem:[#allocation5 + $0x780] sm:$0xff]
    %v595 = vld [vmem:[#allocation5 + $0x788] sm:$0xff]
    %v596 = vld [vmem:[#allocation5 + $0x790] sm:$0xff]
    %v597 = vld [vmem:[#allocation5 + $0x998] sm:$0x1]
    %v598 = vperm.slane %v597, 0
    %599 = vmatpush.msra.mxu0 %v596
    %600 = vmatpush.msra.mxu0 %v595
    %601 = vmatpush.msra.mxu0 %v594
    %602 = vmatpush.msra.mxu0 %v593
    %603 = vmatpush.msra.mxu0 %v592
    %604 = vmatpush.msra.mxu0 %v591
    %605 = vmatpush.msra.mxu0 %v590
    %606 = vmatpush.msra.mxu0 %v589
    %607 = vmatpush.msra.mxu0 %v588
    %608 = vmatpush.msra.mxu0 %v587
    %609 = vmatpush.msra.mxu0 %v586
    %610 = vmatpush.msra.mxu0 %v585
    %611 = vmatpush.msra.mxu0 %v584
    %612 = vmatpush.msra.mxu0 %v583
    %613 = vmatpush.msra.mxu0 %v582
    %614 = vmatpush.msra.mxu0 %v581
    %615 = vmatmul.f32.gmra.mxu0 %v580
    %v616 = vpop.f32.mrf.mxu0
    %v617 = vadd.f32 %v598, %v616
    %618 = vdwg.mxu0
    %v619 = vmax.f32 %v617, 0.0
    %v620 = vld [vmem:[#allocation5 + $0x798] sm:$0xff]
    %v621 = vld [vmem:[#allocation5 + $0x7a0] sm:$0xff]
    %v622 = vld [vmem:[#allocation5 + $0x7a8] sm:$0xff]
    %v623 = vld [vmem:[#allocation5 + $0x7b0] sm:$0xff]
    %v624 = vld [vmem:[#allocation5 + $0x7b8] sm:$0xff]
    %v625 = vld [vmem:[#allocation5 + $0x7c0] sm:$0xff]
    %v626 = vld [vmem:[#allocation5 + $0x7c8] sm:$0xff]
    %v627 = vld [vmem:[#allocation5 + $0x7d0] sm:$0xff]
    %v628 = vld [vmem:[#allocation5 + $0x7d8] sm:$0xff]
    %v629 = vld [vmem:[#allocation5 + $0x7e0] sm:$0xff]
    %v630 = vld [vmem:[#allocation5 + $0x7e8] sm:$0xff]
    %v631 = vld [vmem:[#allocation5 + $0x7f0] sm:$0xff]
    %v632 = vld [vmem:[#allocation5 + $0x7f8] sm:$0xff]
    %v633 = vld [vmem:[#allocation5 + $0x800] sm:$0xff]
    %v634 = vld [vmem:[#allocation5 + $0x808] sm:$0xff]
    %v635 = vld [vmem:[#allocation5 + $0x810] sm:$0xff]
    %v636 = vld [vmem:[#allocation5 + $0x999] sm:$0x1]
    %v637 = vperm.slane %v636, 0
    %638 = vmatpush.msra.mxu0 %v635
    %639 = vmatpush.msra.mxu0 %v634
    %640 = vmatpush.msra.mxu0 %v633
    %641 = vmatpush.msra.mxu0 %v632
    %642 = vmatpush.msra.mxu0 %v631
    %643 = vmatpush.msra.mxu0 %v630
    %644 = vmatpush.msra.mxu0 %v629
    %645 = vmatpush.msra.mxu0 %v628
    %646 = vmatpush.msra.mxu0 %v627
    %647 = vmatpush.msra.mxu0 %v626
    %648 = vmatpush.msra.mxu0 %v625
    %649 = vmatpush.msra.mxu0 %v624
    %650 = vmatpush.msra.mxu0 %v623
    %651 = vmatpush.msra.mxu0 %v622
    %652 = vmatpush.msra.mxu0 %v621
    %653 = vmatpush.msra.mxu0 %v620
    %654 = vmatmul.f32.gmra.mxu0 %v619
    %v655 = vpop.f32.mrf.mxu0
    %v656 = vadd.f32 %v637, %v655
    %657 = vdwg.mxu0
    %v658 = vld [vmem:[#allocation5 + $0x918] sm:$0xff]
    %v659 = vld [vmem:[#allocation5 + $0x920] sm:$0xff]
    %v660 = vld [vmem:[#allocation5 + $0x928] sm:$0xff]
    %v661 = vld [vmem:[#allocation5 + $0x930] sm:$0xff]
    %v662 = vld [vmem:[#allocation5 + $0x938] sm:$0xff]
    %v663 = vld [vmem:[#allocation5 + $0x940] sm:$0xff]
    %v664 = vld [vmem:[#allocation5 + $0x948] sm:$0xff]
    %v665 = vld [vmem:[#allocation5 + $0x950] sm:$0xff]
    %v666 = vld [vmem:[#allocation5 + $0x958] sm:$0xff]
    %v667 = vld [vmem:[#allocation5 + $0x960] sm:$0xff]
    %v668 = vld [vmem:[#allocation5 + $0x968] sm:$0xff]
    %v669 = vld [vmem:[#allocation5 + $0x970] sm:$0xff]
    %v670 = vld [vmem:[#allocation5 + $0x978] sm:$0xff]
    %v671 = vld [vmem:[#allocation5 + $0x980] sm:$0xff]
    %v672 = vld [vmem:[#allocation5 + $0x988] sm:$0xff]
    %v673 = vld [vmem:[#allocation5 + $0x990] sm:$0xff]
    %v674 = vld [vmem:[#allocation5 + $0x99b] sm:$0x1]
    %v675 = vperm.slane %v674, 0
    %676 = vmatpush.msra.mxu0 %v673
    %677 = vmatpush.msra.mxu0 %v672
    %678 = vmatpush.msra.mxu0 %v671
    %679 = vmatpush.msra.mxu0 %v670
    %680 = vmatpush.msra.mxu0 %v669
    %681 = vmatpush.msra.mxu0 %v668
    %682 = vmatpush.msra.mxu0 %v667
    %683 = vmatpush.msra.mxu0 %v666
    %684 = vmatpush.msra.mxu0 %v665
    %685 = vmatpush.msra.mxu0 %v664
    %686 = vmatpush.msra.mxu0 %v663
    %687 = vmatpush.msra.mxu0 %v662
    %688 = vmatpush.msra.mxu0 %v661
    %689 = vmatpush.msra.mxu0 %v660
    %690 = vmatpush.msra.mxu0 %v659
    %691 = vmatpush.msra.mxu0 %v658
    %692 = vmatmul.f32.gmra.mxu0 %v580
    %v693 = vpop.f32.mrf.mxu0
    %v694 = vadd.f32 %v675, %v693
    %695 = vdwg.mxu0
    %v696 = vld [vmem:[#allocation5 + $0x818] sm:$0xff]
    %v697 = vld [vmem:[#allocation5 + $0x820] sm:$0xff]
    %v698 = vld [vmem:[#allocation5 + $0x828] sm:$0xff]
    %v699 = vld [vmem:[#allocation5 + $0x830] sm:$0xff]
    %v700 = vld [vmem:[#allocation5 + $0x838] sm:$0xff]
    %v701 = vld [vmem:[#allocation5 + $0x840] sm:$0xff]
    %v702 = vld [vmem:[#allocation5 + $0x848] sm:$0xff]
    %v703 = vld [vmem:[#allocation5 + $0x850] sm:$0xff]
    %v704 = vld [vmem:[#allocation5 + $0x858] sm:$0xff]
    %v705 = vld [vmem:[#allocation5 + $0x860] sm:$0xff]
    %v706 = vld [vmem:[#allocation5 + $0x868] sm:$0xff]
    %v707 = vld [vmem:[#allocation5 + $0x870] sm:$0xff]
    %v708 = vld [vmem:[#allocation5 + $0x878] sm:$0xff]
    %v709 = vld [vmem:[#allocation5 + $0x880] sm:$0xff]
    %v710 = vld [vmem:[#allocation5 + $0x888] sm:$0xff]
    %v711 = vld [vmem:[#allocation5 + $0x890] sm:$0xff]
    %v712 = vld [vmem:[#allocation5 + $0x898] sm:$0xff]
    %v713 = vld [vmem:[#allocation5 + $0x8a0] sm:$0xff]
    %v714 = vld [vmem:[#allocation5 + $0x8a8] sm:$0xff]
    %v715 = vld [vmem:[#allocation5 + $0x8b0] sm:$0xff]
    %v716 = vld [vmem:[#allocation5 + $0x8b8] sm:$0xff]
    %v717 = vld [vmem:[#allocation5 + $0x8c0] sm:$0xff]
    %v718 = vld [vmem:[#allocation5 + $0x8c8] sm:$0xff]
    %v719 = vld [vmem:[#allocation5 + $0x8d0] sm:$0xff]
    %v720 = vld [vmem:[#allocation5 + $0x8d8] sm:$0xff]
    %v721 = vld [vmem:[#allocation5 + $0x8e0] sm:$0xff]
    %v722 = vld [vmem:[#allocation5 + $0x8e8] sm:$0xff]
    %v723 = vld [vmem:[#allocation5 + $0x8f0] sm:$0xff]
    %v724 = vld [vmem:[#allocation5 + $0x8f8] sm:$0xff]
    %v725 = vld [vmem:[#allocation5 + $0x900] sm:$0xff]
    %v726 = vld [vmem:[#allocation5 + $0x908] sm:$0xff]
    %v727 = vld [vmem:[#allocation5 + $0x910] sm:$0xff]
    %728 = vmatpush.msra.mxu0 %v727
    %729 = vmatpush.msra.mxu0 %v726
    %730 = vmatpush.msra.mxu0 %v725
    %731 = vmatpush.msra.mxu0 %v724
    %732 = vmatpush.msra.mxu0 %v723
    %733 = vmatpush.msra.mxu0 %v722
    %734 = vmatpush.msra.mxu0 %v721
    %735 = vmatpush.msra.mxu0 %v720
    %736 = vmatpush.msra.mxu0 %v719
    %737 = vmatpush.msra.mxu0 %v718
    %738 = vmatpush.msra.mxu0 %v717
    %739 = vmatpush.msra.mxu0 %v716
    %740 = vmatpush.msra.mxu0 %v715
    %741 = vmatpush.msra.mxu0 %v714
    %742 = vmatpush.msra.mxu0 %v713
    %743 = vmatpush.msra.mxu0 %v712
    %744 = vmatmul.f32.gmra.mxu0 %v694
    %v745 = vpop.f32.mrf.mxu0
    %v746 = vadd.f32 0.0, %v745
    %747 = vdwg.mxu0
    %748 = vmatpush.msra.mxu0 %v711
    %749 = vmatpush.msra.mxu0 %v710
    %750 = vmatpush.msra.mxu0 %v709
    %751 = vmatpush.msra.mxu0 %v708
    %752 = vmatpush.msra.mxu0 %v707
    %753 = vmatpush.msra.mxu0 %v706
    %754 = vmatpush.msra.mxu0 %v705
    %755 = vmatpush.msra.mxu0 %v704
    %756 = vmatpush.msra.mxu0 %v703
    %757 = vmatpush.msra.mxu0 %v702
    %758 = vmatpush.msra.mxu0 %v701
    %759 = vmatpush.msra.mxu0 %v700
    %760 = vmatpush.msra.mxu0 %v699
    %761 = vmatpush.msra.mxu0 %v698
    %762 = vmatpush.msra.mxu0 %v697
    %763 = vmatpush.msra.mxu0 %v696
    %764 = vmatmul.f32.gmra.mxu0 %v656
    %v765 = vpop.f32.mrf.mxu0
    %v766 = vadd.f32 %v746, %v765
    %767 = vdwg.mxu0
    %v768 = vld [vmem:[#allocation5 + $0x99a] sm:$0x1]
    %v769 = vperm.slane %v768, 0
    %v770 = vadd.f32 %v766, %v769
    %v771 = vmax.f32 %v770, 0.0
    %v772 = vld [vmem:[#allocation5 + $0x9a0] sm:$0xff]
    %v773 = vld [vmem:[#allocation5 + $0x9a8] sm:$0xff]
    %v774 = vld [vmem:[#allocation5 + $0x9b0] sm:$0xff]
    %v775 = vld [vmem:[#allocation5 + $0x9b8] sm:$0xff]
    %v776 = vld [vmem:[#allocation5 + $0x9c0] sm:$0xff]
    %v777 = vld [vmem:[#allocation5 + $0x9c8] sm:$0xff]
    %v778 = vld [vmem:[#allocation5 + $0x9d0] sm:$0xff]
    %v779 = vld [vmem:[#allocation5 + $0x9d8] sm:$0xff]
    %v780 = vld [vmem:[#allocation5 + $0x9e0] sm:$0xff]
    %v781 = vld [vmem:[#allocation5 + $0x9e8] sm:$0xff]
    %v782 = vld [vmem:[#allocation5 + $0x9f0] sm:$0xff]
    %v783 = vld [vmem:[#allocation5 + $0x9f8] sm:$0xff]
    %v784 = vld [vmem:[#allocation5 + $0xa00] sm:$0xff]
    %v785 = vld [vmem:[#allocation5 + $0xa08] sm:$0xff]
    %v786 = vld [vmem:[#allocation5 + $0xa10] sm:$0xff]
    %v787 = vld [vmem:[#allocation5 + $0xa18] sm:$0xff]
    %788 = vmatpush.msra.mxu0 %v787
    %789 = vmatpush.msra.mxu0 %v786
    %790 = vmatpush.msra.mxu0 %v785
    %791 = vmatpush.msra.mxu0 %v784
    %792 = vmatpush.msra.mxu0 %v783
    %793 = vmatpush.msra.mxu0 %v782
    %794 = vmatpush.msra.mxu0 %v781
    %795 = vmatpush.msra.mxu0 %v780
    %796 = vmatpush.msra.mxu0 %v779
    %797 = vmatpush.msra.mxu0 %v778
    %798 = vmatpush.msra.mxu0 %v777
    %799 = vmatpush.msra.mxu0 %v776
    %800 = vmatpush.msra.mxu0 %v775
    %801 = vmatpush.msra.mxu0 %v774
    %802 = vmatpush.msra.mxu0 %v773
    %803 = vmatpush.msra.mxu0 %v772
    %804 = vmatmul.f32.gmra.mxu0 %v771
    %v805 = vpop.f32.mrf.mxu0
    %v806 = vadd.f32 0.0, %v805
    %807 = vdwg.mxu0
    %808 = vst [vmem:[#allocation7] sm:$0xff] %v806
    %809 = vst [vmem:[#allocation8] sm:$0xff] %v771
    // Predicated region
    $region18: #{tpu_custom_call.1} parent=1 // pred_check
      _
    $region19: #{tpu_custom_call.1} parent=1 // pred_check_branch
      %811 = sbr.rel (0) target = $region21
    $region20: #{tpu_custom_call.1} parent=1 // pred_region
      %813 = vsyncadd [#allocation4], 0
      %s815 = sshll.u32 [#allocation7], 4
      %s816 = int_to_ptr.vmem [resolvable:$true] %s815
      %s817 = sshll.u32 %s2, 4
      %s818 = int_to_ptr.hbm [resolvable:$true] %s817
      %820 = dma.vmem_to_hbm [thread:$0]  %s816, 128, %s818, [#allocation4]
    $region21: #{tpu_custom_call.1} parent=1 // pred_fallthru
      _
    // Predicated region
    $region22: #{tpu_custom_call.1} parent=1 // pred_check
      _
    $region23: #{tpu_custom_call.1} parent=1 // pred_check_branch
      %822 = sbr.rel (0) target = $region25
    $region24: #{tpu_custom_call.1} parent=1 // pred_region
      %824 = vsyncadd [#allocation9], 0
      %s826 = sshll.u32 [#allocation8], 4
      %s827 = int_to_ptr.vmem [resolvable:$true] %s826
      %s828 = sshll.u32 %s3, 4
      %s829 = int_to_ptr.hbm [resolvable:$true] %s828
      %831 = dma.vmem_to_hbm [thread:$0]  %s827, 128, %s829, [#allocation9]
    $region25: #{tpu_custom_call.1} parent=1 // pred_fallthru
      _
    // Predicated region
    $region26: #{tpu_custom_call.1} parent=1 // pred_check
      _
    $region27: #{tpu_custom_call.1} parent=1 // pred_check_branch
      %833 = sbr.rel (0) target = $region29
    $region28: #{tpu_custom_call.1} parent=1 // pred_region
      %835 = dma.done [#allocation4], 128
    $region29: #{tpu_custom_call.1} parent=1 // pred_fallthru
      _
    // Predicated region
    $region30: #{tpu_custom_call.1} parent=1 // pred_check
      _
    $region31: #{tpu_custom_call.1} parent=1 // pred_check_branch
      %837 = sbr.rel (0) target = $region33
    $region32: #{tpu_custom_call.1} parent=1 // pred_region
      %839 = dma.done [#allocation9], 128
    $region33: #{tpu_custom_call.1} parent=1 // pred_fallthru
      _
    %840 = vsyncpa [#allocation3], 1
    %841 = vsyncpa [#allocation6], 1
    %842 = vsyncpa [#allocation4], 1
    %843 = vsyncpa [#allocation9], 1

</llo_original>
